<compile_context>
chip_gen: v7x
topology: tpu7x:2x2x1
jax: 0.10.0
libtpu: 0.0.40
codegen_flags: <defaults>
</compile_context>

<pallas_src>
import jax
import jax.numpy as jnp
from jax.experimental import pallas as pl
from jax.experimental.pallas import tpu as pltpu

LANE = 128
SUBLANE = 8


def _round_up(n, m):
    return -(-n // m) * m


def mlp_kernel(x_ref, w1_ref, b1_ref, w2_ref, b2_ref, w3_ref, b3_ref, o_ref):
    # Everything is feature-major: activations are (features, batch_tile),
    # batch lives on the lane dimension.
    xT = x_ref[...]                                     # (K8, tile_b) f32

    # fc1 on the MXU: (Hp, K8) @ (K8, tile_b) -> (Hp, tile_b), f32 accumulate.
    h1 = jnp.dot(w1_ref[...], xT, preferred_element_type=jnp.float32)
    h1 = jnp.maximum(h1 + b1_ref[...], 0.0)             # f32 epilogue

    # fc2: bf16 operands -> MXU fast path, f32 accumulate, f32 epilogue.
    h2 = jnp.dot(w2_ref[...], h1.astype(jnp.bfloat16),
                 preferred_element_type=jnp.float32)
    h2 = jnp.maximum(h2 + b2_ref[...], 0.0)

    # fc3 transposed: (Op, Hp) @ (Hp, tile_b) -> (Op, tile_b).
    # Op = round_up(out_dim, 8) = 8, so the store is narrow AND lane-dense.
    out = jnp.dot(w3_ref[...], h2.astype(jnp.bfloat16),
                  preferred_element_type=jnp.float32)
    o_ref[...] = (out + b3_ref[...]).astype(o_ref.dtype)


def prepare_params(params):
    """One-time: pad / transpose / cast weights into the kernel's layout.

    params holds PyTorch-equivalent weights pre-transposed to (in, out) plus
    biases.  Hoisted out of the per-call forward so no pad/convert XLA kernels
    run on the hot path.
    """
    w1, b1 = params["w1"], params["b1"]
    w2, b2 = params["w2"], params["b2"]
    w3, b3 = params["w3"], params["b3"]
    in_dim, hidden = w1.shape
    out_dim = w3.shape[1]

    K8 = _round_up(in_dim, SUBLANE)      # fc1 contraction dim, padded 3 -> 8
    Hp = _round_up(hidden, LANE)         # hidden dim, padded to 128
    Op = _round_up(out_dim, SUBLANE)     # output dim, padded only to 8

    # Zero-padded rows/cols stay exactly zero through bias+ReLU, so padding
    # never changes the numerics.
    w1t = jnp.zeros((Hp, K8), jnp.float32).at[:hidden, :in_dim].set(
        w1.T.astype(jnp.float32))
    b1c = jnp.zeros((Hp, 1), jnp.float32).at[:hidden, 0].set(
        b1.astype(jnp.float32))
    w2t = jnp.zeros((Hp, Hp), jnp.bfloat16).at[:hidden, :hidden].set(
        w2.T.astype(jnp.bfloat16))
    b2c = jnp.zeros((Hp, 1), jnp.float32).at[:hidden, 0].set(
        b2.astype(jnp.float32))
    w3t = jnp.zeros((Op, Hp), jnp.bfloat16).at[:out_dim, :hidden].set(
        w3.T.astype(jnp.bfloat16))
    b3c = jnp.zeros((Op, 1), jnp.float32).at[:out_dim, 0].set(
        b3.astype(jnp.float32))

    return {"w1t": w1t, "b1c": b1c, "w2t": w2t, "b2c": b2c,
            "w3t": w3t, "b3c": b3c, "out_dim": out_dim}


def policy_network_forward(x, padded, tile_b=4096):
    """x: (B, input_dim) float32. padded: output of prepare_params()."""
    w1t, b1c = padded["w1t"], padded["b1c"]
    w2t, b2c = padded["w2t"], padded["b2c"]
    w3t, b3c = padded["w3t"], padded["b3c"]
    out_dim = padded["out_dim"]

    B, in_dim = x.shape
    Hp, K8 = w1t.shape
    Op = w3t.shape[0]

    # Batch lives on the lane dim, so tiles must be 128-dense.  Ensure at
    # least 2 grid steps whenever the padded batch allows it so both v7x
    # TensorCores get work (weights are tiny; duplicating per core is free).
    bp_min = _round_up(B, LANE)
    tile_b = max(LANE, (min(tile_b, bp_min) // LANE) * LANE)
    if bp_min >= 2 * LANE:
        tile_b = min(tile_b, max(LANE, (bp_min // 2) // LANE * LANE))
    Bp = _round_up(B, tile_b)
    grid = (Bp // tile_b,)

    # Feature-major activations: (K8, Bp), zero-padded rows/lanes.
    xT = jnp.zeros((K8, Bp), jnp.float32).at[:in_dim, :B].set(
        x.T.astype(jnp.float32))

    flops = 2 * Bp * (K8 * Hp + Hp * Hp + Hp * Op)
    bytes_accessed = (xT.size * 4 + w1t.size * 4 + w2t.size * 2 + w3t.size * 2
                      + (b1c.size + b2c.size + b3c.size) * 4 + Op * Bp * 4)

    out_t = pl.pallas_call(
        mlp_kernel,
        out_shape=jax.ShapeDtypeStruct((Op, Bp), jnp.float32),
        grid=grid,
        in_specs=[
            pl.BlockSpec((K8, tile_b), lambda b: (0, b)),   # x: streamed
            pl.BlockSpec((Hp, K8), lambda b: (0, 0)),       # weights/biases:
            pl.BlockSpec((Hp, 1), lambda b: (0, 0)),        # VMEM-resident,
            pl.BlockSpec((Hp, Hp), lambda b: (0, 0)),       # constant index
            pl.BlockSpec((Hp, 1), lambda b: (0, 0)),        # maps -> fetched
            pl.BlockSpec((Op, Hp), lambda b: (0, 0)),       # once
            pl.BlockSpec((Op, 1), lambda b: (0, 0)),
        ],
        out_specs=pl.BlockSpec((Op, tile_b), lambda b: (0, b)),
        compiler_params=pltpu.CompilerParams(
            dimension_semantics=("parallel",)),
        cost_estimate=pl.CostEstimate(flops=int(flops), transcendentals=0,
                                      bytes_accessed=int(bytes_accessed)),
    )(xT, w1t, b1c, w2t, b2c, w3t, b3c)

    return out_t[:out_dim, :B].T


def xavier_uniform(key, fan_out, fan_in, dtype=jnp.float32):
    # Matches torch.nn.init.xavier_uniform_ on a (fan_out, fan_in) weight.
    limit = jnp.sqrt(6.0 / (fan_in + fan_out))
    return jax.random.uniform(key, (fan_out, fan_in), dtype, -limit, limit)


def init_params(key, input_dim=3, hidden_dim=64, output_dim=2):
    k1, k2, k3 = jax.random.split(key, 3)
    # PyTorch Linear stores weight as (out, in); pre-transpose to (in, out).
    return {
        "w1": xavier_uniform(k1, hidden_dim, input_dim).T,
        "b1": jnp.zeros((hidden_dim,), jnp.float32),
        "w2": xavier_uniform(k2, hidden_dim, hidden_dim).T,
        "b2": jnp.zeros((hidden_dim,), jnp.float32),
        "w3": xavier_uniform(k3, output_dim, hidden_dim).T,
        "b3": jnp.zeros((output_dim,), jnp.float32),
    }


def reference_forward_f32(x, params):
    h1 = jnp.maximum(x @ params["w1"] + params["b1"], 0.0)
    h2 = jnp.maximum(h1 @ params["w2"] + params["b2"], 0.0)
    return h2 @ params["w3"] + params["b3"]


def reference_forward_mixed(x, params):
    # Mimics the kernel's precision: f32 fc1, bf16-operand / f32-accum fc2+fc3.
    h1 = jnp.maximum(x @ params["w1"] + params["b1"], 0.0)
    h2 = jnp.dot(h1.astype(jnp.bfloat16), params["w2"].astype(jnp.bfloat16),
                 preferred_element_type=jnp.float32)
    h2 = jnp.maximum(h2 + params["b2"], 0.0)
    out = jnp.dot(h2.astype(jnp.bfloat16), params["w3"].astype(jnp.bfloat16),
                  preferred_element_type=jnp.float32)
    return out + params["b3"]


if __name__ == "__main__":
    key = jax.random.PRNGKey(0)
    pkey, xkey, xkey2 = jax.random.split(key, 3)

    input_dim, hidden_dim, output_dim = 3, 64, 2
    params = init_params(pkey, input_dim, hidden_dim, output_dim)
    padded = prepare_params(params)   # one-time padding/cast, off the hot path

    # Small case: batch=8 -> single 128-lane grid step.
    x = jax.random.normal(xkey, (8, input_dim), jnp.float32)
    out = jax.block_until_ready(policy_network_forward(x, padded))
    assert out.shape == (8, output_dim)
    assert jnp.allclose(out, reference_forward_mixed(x, params),
                        atol=1e-2, rtol=1e-2)
    assert jnp.allclose(out, reference_forward_f32(x, params),
                        atol=5e-2, rtol=5e-2)

    # Batched case: B=300 -> padded to 384 lanes, 3 grid steps of 128
    # (exercises batch padding and the multi-step / two-TensorCore path).
    x2 = jax.random.normal(xkey2, (300, input_dim), jnp.float32)
    out2 = jax.block_until_ready(policy_network_forward(x2, padded))
    assert out2.shape == (300, output_dim)
    assert jnp.allclose(out2, reference_forward_mixed(x2, params),
                        atol=1e-2, rtol=1e-2)

    print("KERNEL_OK")
</pallas_src>

<mosaic_0001>
module attributes {stable_mosaic.version = 11 : i64} {
  func.func @mlp_kernel(%arg0: i32, %arg1: memref<8x128xf32, #tpu.memory_space<vmem>>, %arg2: memref<128x8xf32, #tpu.memory_space<vmem>>, %arg3: memref<128x1xf32, #tpu.memory_space<vmem>>, %arg4: memref<128x128xbf16, #tpu.memory_space<vmem>>, %arg5: memref<128x1xf32, #tpu.memory_space<vmem>>, %arg6: memref<8x128xbf16, #tpu.memory_space<vmem>>, %arg7: memref<8x1xf32, #tpu.memory_space<vmem>>, %arg8: memref<8x128xf32, #tpu.memory_space<vmem>>) attributes {dimension_semantics = [#tpu.dimension_semantics<parallel>], iteration_bounds = array<i64: 1>, scalar_prefetch = 0 : i64, scratch_operands = 0 : i64, tpu.core_type = #tpu.core_type<tc>, window_params = [{transform_indices = @transform_0, window_bounds = array<i64: 8, 128>}, {pipeline_mode = #tpu.pipeline_mode<synchronous>, transform_indices = @transform_1, window_bounds = array<i64: 128, 8>}, {pipeline_mode = #tpu.pipeline_mode<synchronous>, transform_indices = @transform_2, window_bounds = array<i64: 128, 1>}, {pipeline_mode = #tpu.pipeline_mode<synchronous>, transform_indices = @transform_3, window_bounds = array<i64: 128, 128>}, {pipeline_mode = #tpu.pipeline_mode<synchronous>, transform_indices = @transform_4, window_bounds = array<i64: 128, 1>}, {pipeline_mode = #tpu.pipeline_mode<synchronous>, transform_indices = @transform_5, window_bounds = array<i64: 8, 128>}, {pipeline_mode = #tpu.pipeline_mode<synchronous>, transform_indices = @transform_6, window_bounds = array<i64: 8, 1>}, {transform_indices = @transform_7, window_bounds = array<i64: 8, 128>}]} {
    %c0 = arith.constant 0 : index
    %c0_0 = arith.constant 0 : index
    %0 = vector.load %arg1[%c0, %c0_0] : memref<8x128xf32, #tpu.memory_space<vmem>>, vector<8x128xf32>
    %c0_1 = arith.constant 0 : index
    %c0_2 = arith.constant 0 : index
    %1 = vector.load %arg2[%c0_1, %c0_2] : memref<128x8xf32, #tpu.memory_space<vmem>>, vector<128x8xf32>
    %cst = arith.constant dense<0.000000e+00> : vector<128x128xf32>
    %2 = tpu.matmul %1, %0, %cst {dimension_numbers = #tpu.dot_dimension_numbers<[1], [0], [0], [1], [0, 0, 1, 1], [], []>} : vector<128x8xf32>, vector<8x128xf32>, vector<128x128xf32> -> vector<128x128xf32>
    %c0_3 = arith.constant 0 : index
    %c0_4 = arith.constant 0 : index
    %3 = vector.load %arg3[%c0_3, %c0_4] : memref<128x1xf32, #tpu.memory_space<vmem>>, vector<128x1xf32>
    %4 = vector.broadcast %3 : vector<128x1xf32> to vector<128x128xf32>
    %5 = arith.addf %2, %4 : vector<128x128xf32>
    %cst_5 = arith.constant 0.000000e+00 : f32
    %6 = vector.broadcast %cst_5 : f32 to vector<128x128xf32>
    %7 = arith.maximumf %5, %6 : vector<128x128xf32>
    %c0_6 = arith.constant 0 : index
    %c0_7 = arith.constant 0 : index
    %8 = vector.load %arg4[%c0_6, %c0_7] : memref<128x128xbf16, #tpu.memory_space<vmem>>, vector<128x128xbf16>
    %9 = arith.truncf %7 : vector<128x128xf32> to vector<128x128xbf16>
    %cst_8 = arith.constant dense<0.000000e+00> : vector<128x128xf32>
    %10 = tpu.matmul %8, %9, %cst_8 {dimension_numbers = #tpu.dot_dimension_numbers<[1], [0], [0], [1], [0, 0, 1, 1], [], []>} : vector<128x128xbf16>, vector<128x128xbf16>, vector<128x128xf32> -> vector<128x128xf32>
    %c0_9 = arith.constant 0 : index
    %c0_10 = arith.constant 0 : index
    %11 = vector.load %arg5[%c0_9, %c0_10] : memref<128x1xf32, #tpu.memory_space<vmem>>, vector<128x1xf32>
    %12 = vector.broadcast %11 : vector<128x1xf32> to vector<128x128xf32>
    %13 = arith.addf %10, %12 : vector<128x128xf32>
    %cst_11 = arith.constant 0.000000e+00 : f32
    %14 = vector.broadcast %cst_11 : f32 to vector<128x128xf32>
    %15 = arith.maximumf %13, %14 : vector<128x128xf32>
    %c0_12 = arith.constant 0 : index
    %c0_13 = arith.constant 0 : index
    %16 = vector.load %arg6[%c0_12, %c0_13] : memref<8x128xbf16, #tpu.memory_space<vmem>>, vector<8x128xbf16>
    %17 = arith.truncf %15 : vector<128x128xf32> to vector<128x128xbf16>
    %cst_14 = arith.constant dense<0.000000e+00> : vector<8x128xf32>
    %18 = tpu.matmul %16, %17, %cst_14 {dimension_numbers = #tpu.dot_dimension_numbers<[1], [0], [0], [1], [0, 0, 1, 1], [], []>} : vector<8x128xbf16>, vector<128x128xbf16>, vector<8x128xf32> -> vector<8x128xf32>
    %c0_15 = arith.constant 0 : index
    %c0_16 = arith.constant 0 : index
    %19 = vector.load %arg7[%c0_15, %c0_16] : memref<8x1xf32, #tpu.memory_space<vmem>>, vector<8x1xf32>
    %20 = vector.broadcast %19 : vector<8x1xf32> to vector<8x128xf32>
    %21 = arith.addf %18, %20 : vector<8x128xf32>
    %c0_17 = arith.constant 0 : index
    %c0_18 = arith.constant 0 : index
    %22 = vector.load %arg8[%c0_17, %c0_18] : memref<8x128xf32, #tpu.memory_space<vmem>>, vector<8x128xf32>
    tpu.vector_store %arg8[%c0_17, %c0_18], %21 {strides = array<i32>} : memref<8x128xf32, #tpu.memory_space<vmem>>, vector<8x128xf32>,
    return
  }
  func.func @transform_0(%arg0: i32) -> (i32, i32) {
    %c0_i32 = arith.constant 0 : i32
    %c0_i32_0 = arith.constant 0 : i32
    return %c0_i32, %arg0 : i32, i32
  }
  func.func @transform_1(%arg0: i32) -> (i32, i32) {
    %c0_i32 = arith.constant 0 : i32
    %c0_i32_0 = arith.constant 0 : i32
    %c0_i32_1 = arith.constant 0 : i32
    return %c0_i32, %c0_i32_0 : i32, i32
  }
  func.func @transform_2(%arg0: i32) -> (i32, i32) {
    %c0_i32 = arith.constant 0 : i32
    %c0_i32_0 = arith.constant 0 : i32
    %c0_i32_1 = arith.constant 0 : i32
    return %c0_i32, %c0_i32_0 : i32, i32
  }
  func.func @transform_3(%arg0: i32) -> (i32, i32) {
    %c0_i32 = arith.constant 0 : i32
    %c0_i32_0 = arith.constant 0 : i32
    %c0_i32_1 = arith.constant 0 : i32
    return %c0_i32, %c0_i32_0 : i32, i32
  }
  func.func @transform_4(%arg0: i32) -> (i32, i32) {
    %c0_i32 = arith.constant 0 : i32
    %c0_i32_0 = arith.constant 0 : i32
    %c0_i32_1 = arith.constant 0 : i32
    return %c0_i32, %c0_i32_0 : i32, i32
  }
  func.func @transform_5(%arg0: i32) -> (i32, i32) {
    %c0_i32 = arith.constant 0 : i32
    %c0_i32_0 = arith.constant 0 : i32
    %c0_i32_1 = arith.constant 0 : i32
    return %c0_i32, %c0_i32_0 : i32, i32
  }
  func.func @transform_6(%arg0: i32) -> (i32, i32) {
    %c0_i32 = arith.constant 0 : i32
    %c0_i32_0 = arith.constant 0 : i32
    %c0_i32_1 = arith.constant 0 : i32
    return %c0_i32, %c0_i32_0 : i32, i32
  }
  func.func @transform_7(%arg0: i32) -> (i32, i32) {
    %c0_i32 = arith.constant 0 : i32
    %c0_i32_0 = arith.constant 0 : i32
    return %c0_i32, %arg0 : i32, i32
  }
}

</mosaic_0001>

<llo_original>
// kernel: tpu_custom_call.1
$region0: #{tpu_custom_call.1}
  #allocation0 [shape = 'u32[]', space=smem, size = 0x4, offset = 0x4, fixed_abs, tag = 'smem constant byte address 0x4 - core index']
  #allocation1 [shape = 'u32[144,128]{1,0:T(1,128)}', space=vmem, size = 0x12000, scoped, tag = 'internal scratch']
  %s0 = inlined_call_operand.vmem [shape: f32[8,128], index: 0, kind: input, shape index: {}]
  %s1 = inlined_call_operand.vmem [shape: f32[128,8], index: 1, kind: input, shape index: {}]
  %s2 = inlined_call_operand.vmem [shape: f32[128,1], index: 2, kind: input, shape index: {}]
  %s3 = inlined_call_operand.vmem [shape: bf16[128,128], index: 3, kind: input, shape index: {}]
  %s4 = inlined_call_operand.vmem [shape: f32[128,1], index: 4, kind: input, shape index: {}]
  %s5 = inlined_call_operand.vmem [shape: bf16[8,128], index: 5, kind: input, shape index: {}]
  %s6 = inlined_call_operand.vmem [shape: f32[8,1], index: 6, kind: input, shape index: {}]
  %s7 = inlined_call_operand.hbm [shape: f32[8,128], index: 7, kind: output, shape index: {}]
  %s8 = sld [smem:[#allocation0]]
  $region38: #{tpu_custom_call.1} parent=0
    _
  %s10 = ssub.s32 1, %s8
  %s11 = scalar_select 0, %s10, %s8
  $region1: #{tpu_custom_call.1} parent=0
    #allocation2 [shape = 'u8[4096]{0}', space=vmem, size = 0x1000, scoped, tag = 'output window, operand 0, single buffered']
    #allocation3 [shape = 's32[1]{0}', space=sflag, size = 0x4, scoped, tag = 'scoped memory for tpu_custom_call.1']
    %12 = vsyncpa [#allocation3], 0
    // Predicated region
    $region2: #{tpu_custom_call.1} parent=1 // pred_check
      _
    $region3: #{tpu_custom_call.1} parent=1 // pred_check_branch
      %14 = sbr.rel (0) target = $region5
    $region4: #{tpu_custom_call.1} parent=1 // pred_region
      _
    $region5: #{tpu_custom_call.1} parent=1 // pred_fallthru
      _
    // Predicated region
    $region6: #{tpu_custom_call.1} parent=1 // pred_check
      _
    $region7: #{tpu_custom_call.1} parent=1 // pred_check_branch
      %16 = sbr.rel (0) target = $region9
    $region8: #{tpu_custom_call.1} parent=1 // pred_region
      _
    $region9: #{tpu_custom_call.1} parent=1 // pred_fallthru
      _
    // Predicated region
    $region10: #{tpu_custom_call.1} parent=1 // pred_check
      _
    $region11: #{tpu_custom_call.1} parent=1 // pred_check_branch
      %18 = sbr.rel (0) target = $region13
    $region12: #{tpu_custom_call.1} parent=1 // pred_region
      _
    $region13: #{tpu_custom_call.1} parent=1 // pred_fallthru
      _
    // Predicated region
    $region14: #{tpu_custom_call.1} parent=1 // pred_check
      _
    $region15: #{tpu_custom_call.1} parent=1 // pred_check_branch
      %20 = sbr.rel (0) target = $region17
    $region16: #{tpu_custom_call.1} parent=1 // pred_region
      _
    $region17: #{tpu_custom_call.1} parent=1 // pred_fallthru
      _
    // Predicated region
    $region18: #{tpu_custom_call.1} parent=1 // pred_check
      _
    $region19: #{tpu_custom_call.1} parent=1 // pred_check_branch
      %22 = sbr.rel (0) target = $region21
    $region20: #{tpu_custom_call.1} parent=1 // pred_region
      _
    $region21: #{tpu_custom_call.1} parent=1 // pred_fallthru
      _
    // Predicated region
    $region22: #{tpu_custom_call.1} parent=1 // pred_check
      _
    $region23: #{tpu_custom_call.1} parent=1 // pred_check_branch
      %24 = sbr.rel (0) target = $region25
    $region24: #{tpu_custom_call.1} parent=1 // pred_region
      _
    $region25: #{tpu_custom_call.1} parent=1 // pred_fallthru
      _
    // Predicated region
    $region26: #{tpu_custom_call.1} parent=1 // pred_check
      _
    $region27: #{tpu_custom_call.1} parent=1 // pred_check_branch
      %26 = sbr.rel (0) target = $region29
    $region28: #{tpu_custom_call.1} parent=1 // pred_region
      _
    $region29: #{tpu_custom_call.1} parent=1 // pred_fallthru
      _
    %v28 = vld [vmem:[%s0] sm:$0xff]
    %v29 = vld [vmem:[%s1] sm:$0xff]
    %v30 = vld [vmem:[%s1 + $0x8] sm:$0xff]
    %v31 = vld [vmem:[%s1 + $0x10] sm:$0xff]
    %v32 = vld [vmem:[%s1 + $0x18] sm:$0xff]
    %v33 = vld [vmem:[%s1 + $0x20] sm:$0xff]
    %v34 = vld [vmem:[%s1 + $0x28] sm:$0xff]
    %v35 = vld [vmem:[%s1 + $0x30] sm:$0xff]
    %v36 = vld [vmem:[%s1 + $0x38] sm:$0xff]
    %v37 = vld [vmem:[%s1 + $0x40] sm:$0xff]
    %v38 = vld [vmem:[%s1 + $0x48] sm:$0xff]
    %v39 = vld [vmem:[%s1 + $0x50] sm:$0xff]
    %v40 = vld [vmem:[%s1 + $0x58] sm:$0xff]
    %v41 = vld [vmem:[%s1 + $0x60] sm:$0xff]
    %v42 = vld [vmem:[%s1 + $0x68] sm:$0xff]
    %v43 = vld [vmem:[%s1 + $0x70] sm:$0xff]
    %v44 = vld [vmem:[%s1 + $0x78] sm:$0xff]
    %v45 = vld [vmem:[%s2] sm:$0xff]
    %v46 = vld [vmem:[%s2 + $0x8] sm:$0xff]
    %v47 = vld [vmem:[%s2 + $0x10] sm:$0xff]
    %v48 = vld [vmem:[%s2 + $0x18] sm:$0xff]
    %v49 = vld [vmem:[%s2 + $0x20] sm:$0xff]
    %v50 = vld [vmem:[%s2 + $0x28] sm:$0xff]
    %v51 = vld [vmem:[%s2 + $0x30] sm:$0xff]
    %v52 = vld [vmem:[%s2 + $0x38] sm:$0xff]
    %v53 = vld [vmem:[%s2 + $0x40] sm:$0xff]
    %v54 = vld [vmem:[%s2 + $0x48] sm:$0xff]
    %v55 = vld [vmem:[%s2 + $0x50] sm:$0xff]
    %v56 = vld [vmem:[%s2 + $0x58] sm:$0xff]
    %v57 = vld [vmem:[%s2 + $0x60] sm:$0xff]
    %v58 = vld [vmem:[%s2 + $0x68] sm:$0xff]
    %v59 = vld [vmem:[%s2 + $0x70] sm:$0xff]
    %v60 = vld [vmem:[%s2 + $0x78] sm:$0xff]
    %62 = vset.pattern.permute.xlu0 0
    %63 = vperm.xlu0 %62, %v45
    %v64 = vpop.permute.xlu0 %63
    %67 = vset.pattern.permute.xlu0 0
    %68 = vperm.xlu0 %67, %v46
    %v69 = vpop.permute.xlu0 %68
    %72 = vset.pattern.permute.xlu0 0
    %73 = vperm.xlu0 %72, %v47
    %v74 = vpop.permute.xlu0 %73
    %77 = vset.pattern.permute.xlu0 0
    %78 = vperm.xlu0 %77, %v48
    %v79 = vpop.permute.xlu0 %78
    %82 = vset.pattern.permute.xlu0 0
    %83 = vperm.xlu0 %82, %v49
    %v84 = vpop.permute.xlu0 %83
    %87 = vset.pattern.permute.xlu0 0
    %88 = vperm.xlu0 %87, %v50
    %v89 = vpop.permute.xlu0 %88
    %92 = vset.pattern.permute.xlu0 0
    %93 = vperm.xlu0 %92, %v51
    %v94 = vpop.permute.xlu0 %93
    %97 = vset.pattern.permute.xlu0 0
    %98 = vperm.xlu0 %97, %v52
    %v99 = vpop.permute.xlu0 %98
    %102 = vset.pattern.permute.xlu0 0
    %103 = vperm.xlu0 %102, %v53
    %v104 = vpop.permute.xlu0 %103
    %107 = vset.pattern.permute.xlu0 0
    %108 = vperm.xlu0 %107, %v54
    %v109 = vpop.permute.xlu0 %108
    %112 = vset.pattern.permute.xlu0 0
    %113 = vperm.xlu0 %112, %v55
    %v114 = vpop.permute.xlu0 %113
    %117 = vset.pattern.permute.xlu0 0
    %118 = vperm.xlu0 %117, %v56
    %v119 = vpop.permute.xlu0 %118
    %122 = vset.pattern.permute.xlu0 0
    %123 = vperm.xlu0 %122, %v57
    %v124 = vpop.permute.xlu0 %123
    %127 = vset.pattern.permute.xlu0 0
    %128 = vperm.xlu0 %127, %v58
    %v129 = vpop.permute.xlu0 %128
    %132 = vset.pattern.permute.xlu0 0
    %133 = vperm.xlu0 %132, %v59
    %v134 = vpop.permute.xlu0 %133
    %137 = vset.pattern.permute.xlu0 0
    %138 = vperm.xlu0 %137, %v60
    %v139 = vpop.permute.xlu0 %138
    %vm141 = vcmask 64512
    %v143 = vsel %vm141, %v29, 0
    %v146 = vsel %vm141, %v30, 0
    %v149 = vsel %vm141, %v31, 0
    %v152 = vsel %vm141, %v32, 0
    %v155 = vsel %vm141, %v33, 0
    %v158 = vsel %vm141, %v34, 0
    %v161 = vsel %vm141, %v35, 0
    %v164 = vsel %vm141, %v36, 0
    %v167 = vsel %vm141, %v37, 0
    %v170 = vsel %vm141, %v38, 0
    %v173 = vsel %vm141, %v39, 0
    %v176 = vsel %vm141, %v40, 0
    %v179 = vsel %vm141, %v41, 0
    %v182 = vsel %vm141, %v42, 0
    %v185 = vsel %vm141, %v43, 0
    %v188 = vsel %vm141, %v44, 0
    %190 = vmatprep.subr.mxu0 0.0
    %191 = vmatpush1.msra.mxu0 %v28
    %192 = vmatprep.subr.mxu0 0.0
    %193 = vmatpush1.msra.mxu0 0.0
    %194 = vmatprep.subr.mxu0 0.0
    %195 = vmatpush1.msra.mxu0 0.0
    %196 = vmatprep.subr.mxu0 0.0
    %197 = vmatpush1.msra.mxu0 0.0
    %198 = vmatprep.subr.mxu0 0.0
    %199 = vmatpush1.msra.mxu0 0.0
    %200 = vmatprep.subr.mxu0 0.0
    %201 = vmatpush1.msra.mxu0 0.0
    %202 = vmatprep.subr.mxu0 0.0
    %203 = vmatpush1.msra.mxu0 0.0
    %204 = vmatprep.subr.mxu0 0.0
    %205 = vmatpush1.msra.mxu0 0.0
    %206 = vmatprep.subr.mxu0 0.0
    %207 = vmatpush1.msra.mxu0 0.0
    %208 = vmatprep.subr.mxu0 0.0
    %209 = vmatpush1.msra.mxu0 0.0
    %210 = vmatprep.subr.mxu0 0.0
    %211 = vmatpush1.msra.mxu0 0.0
    %212 = vmatprep.subr.mxu0 0.0
    %213 = vmatpush1.msra.mxu0 0.0
    %214 = vmatprep.subr.mxu0 0.0
    %215 = vmatpush1.msra.mxu0 0.0
    %216 = vmatprep.subr.mxu0 0.0
    %217 = vmatpush1.msra.mxu0 0.0
    %218 = vmatprep.subr.mxu0 0.0
    %219 = vmatpush1.msra.mxu0 0.0
    %220 = vmatprep.subr.mxu0 0.0
    %221 = vmatpush1.msra.mxu0 0.0
    %222 = vmatprep.subr.mxu0 0.0
    %223 = vmatpush1.msra.mxu0 0.0
    %224 = vmatprep.subr.mxu0 0.0
    %225 = vmatpush1.msra.mxu0 0.0
    %226 = vmatprep.subr.mxu0 0.0
    %227 = vmatpush1.msra.mxu0 0.0
    %228 = vmatprep.subr.mxu0 0.0
    %229 = vmatpush1.msra.mxu0 0.0
    %230 = vmatprep.subr.mxu0 0.0
    %231 = vmatpush1.msra.mxu0 0.0
    %232 = vmatprep.subr.mxu0 0.0
    %233 = vmatpush1.msra.mxu0 0.0
    %234 = vmatprep.subr.mxu0 0.0
    %235 = vmatpush1.msra.mxu0 0.0
    %236 = vmatprep.subr.mxu0 0.0
    %237 = vmatpush1.msra.mxu0 0.0
    %238 = vmatprep.subr.mxu0 0.0
    %239 = vmatpush1.msra.mxu0 0.0
    %240 = vmatprep.subr.mxu0 0.0
    %241 = vmatpush1.msra.mxu0 0.0
    %242 = vmatprep.subr.mxu0 0.0
    %243 = vmatpush1.msra.mxu0 0.0
    %244 = vmatprep.subr.mxu0 0.0
    %245 = vmatpush1.msra.mxu0 0.0
    %246 = vmatprep.subr.mxu0 0.0
    %247 = vmatpush1.msra.mxu0 0.0
    %248 = vmatprep.subr.mxu0 0.0
    %249 = vmatpush1.msra.mxu0 0.0
    %250 = vmatprep.subr.mxu0 0.0
    %251 = vmatpush1.msra.mxu0 0.0
    %252 = vmatprep.subr.mxu0 0.0
    %253 = vmatpush1.msra.mxu0 0.0
    %254 = vmatprep.mubr.f32.mxu0 0.0
    %255 = vmatmul.mubr.f32.gmra.mrb[0].mxu0 %v143
    %v256 = vpop.f32.mrb[0].mxu0
    %v257 = vadd.f32 %v64, %v256
    %v258 = vpop.f32.mrb[0].mxu0
    %259 = vmatprep.mubr.f32.mxu0 0.0
    %260 = vmatmul.mubr.f32.gmra.mrb[0].mxu0 %v146
    %v261 = vpop.f32.mrb[0].mxu0
    %v262 = vadd.f32 %v69, %v261
    %v263 = vpop.f32.mrb[0].mxu0
    %264 = vmatprep.mubr.f32.mxu0 0.0
    %265 = vmatmul.mubr.f32.gmra.mrb[0].mxu0 %v149
    %v266 = vpop.f32.mrb[0].mxu0
    %v267 = vadd.f32 %v74, %v266
    %v268 = vpop.f32.mrb[0].mxu0
    %269 = vmatprep.mubr.f32.mxu0 0.0
    %270 = vmatmul.mubr.f32.gmra.mrb[0].mxu0 %v152
    %v271 = vpop.f32.mrb[0].mxu0
    %v272 = vadd.f32 %v79, %v271
    %v273 = vpop.f32.mrb[0].mxu0
    %274 = vmatprep.mubr.f32.mxu0 0.0
    %275 = vmatmul.mubr.f32.gmra.mrb[0].mxu0 %v155
    %v276 = vpop.f32.mrb[0].mxu0
    %v277 = vadd.f32 %v84, %v276
    %v278 = vpop.f32.mrb[0].mxu0
    %279 = vmatprep.mubr.f32.mxu0 0.0
    %280 = vmatmul.mubr.f32.gmra.mrb[0].mxu0 %v158
    %v281 = vpop.f32.mrb[0].mxu0
    %v282 = vadd.f32 %v89, %v281
    %v283 = vpop.f32.mrb[0].mxu0
    %284 = vmatprep.mubr.f32.mxu0 0.0
    %285 = vmatmul.mubr.f32.gmra.mrb[0].mxu0 %v161
    %v286 = vpop.f32.mrb[0].mxu0
    %v287 = vadd.f32 %v94, %v286
    %v288 = vpop.f32.mrb[0].mxu0
    %289 = vmatprep.mubr.f32.mxu0 0.0
    %290 = vmatmul.mubr.f32.gmra.mrb[0].mxu0 %v164
    %v291 = vpop.f32.mrb[0].mxu0
    %v292 = vadd.f32 %v99, %v291
    %v293 = vpop.f32.mrb[0].mxu0
    %294 = vmatprep.mubr.f32.mxu0 0.0
    %295 = vmatmul.mubr.f32.gmra.mrb[0].mxu0 %v167
    %v296 = vpop.f32.mrb[0].mxu0
    %v297 = vadd.f32 %v104, %v296
    %v298 = vpop.f32.mrb[0].mxu0
    %299 = vmatprep.mubr.f32.mxu0 0.0
    %300 = vmatmul.mubr.f32.gmra.mrb[0].mxu0 %v170
    %v301 = vpop.f32.mrb[0].mxu0
    %v302 = vadd.f32 %v109, %v301
    %v303 = vpop.f32.mrb[0].mxu0
    %304 = vmatprep.mubr.f32.mxu0 0.0
    %305 = vmatmul.mubr.f32.gmra.mrb[0].mxu0 %v173
    %v306 = vpop.f32.mrb[0].mxu0
    %v307 = vadd.f32 %v114, %v306
    %v308 = vpop.f32.mrb[0].mxu0
    %309 = vmatprep.mubr.f32.mxu0 0.0
    %310 = vmatmul.mubr.f32.gmra.mrb[0].mxu0 %v176
    %v311 = vpop.f32.mrb[0].mxu0
    %v312 = vadd.f32 %v119, %v311
    %v313 = vpop.f32.mrb[0].mxu0
    %314 = vmatprep.mubr.f32.mxu0 0.0
    %315 = vmatmul.mubr.f32.gmra.mrb[0].mxu0 %v179
    %v316 = vpop.f32.mrb[0].mxu0
    %v317 = vadd.f32 %v124, %v316
    %v318 = vpop.f32.mrb[0].mxu0
    %319 = vmatprep.mubr.f32.mxu0 0.0
    %320 = vmatmul.mubr.f32.gmra.mrb[0].mxu0 %v182
    %v321 = vpop.f32.mrb[0].mxu0
    %v322 = vadd.f32 %v129, %v321
    %v323 = vpop.f32.mrb[0].mxu0
    %324 = vmatprep.mubr.f32.mxu0 0.0
    %325 = vmatmul.mubr.f32.gmra.mrb[0].mxu0 %v185
    %v326 = vpop.f32.mrb[0].mxu0
    %v327 = vadd.f32 %v134, %v326
    %v328 = vpop.f32.mrb[0].mxu0
    %329 = vmatprep.mubr.f32.mxu0 0.0
    %330 = vmatmul.mubr.f32.gmra.mrb[0].mxu0 %v188
    %v331 = vpop.f32.mrb[0].mxu0
    %v332 = vadd.f32 %v139, %v331
    %v333 = vpop.f32.mrb[0].mxu0
    %334 = vdwg.mxu0
    %v335 = vmax.f32 %v257, 0.0
    %v336 = vmax.f32 %v262, 0.0
    %v337 = vmax.f32 %v267, 0.0
    %v338 = vmax.f32 %v272, 0.0
    %v339 = vmax.f32 %v277, 0.0
    %v340 = vmax.f32 %v282, 0.0
    %v341 = vmax.f32 %v287, 0.0
    %v342 = vmax.f32 %v292, 0.0
    %v343 = vmax.f32 %v297, 0.0
    %v344 = vmax.f32 %v302, 0.0
    %v345 = vmax.f32 %v307, 0.0
    %v346 = vmax.f32 %v312, 0.0
    %v347 = vmax.f32 %v317, 0.0
    %v348 = vmax.f32 %v322, 0.0
    %v349 = vmax.f32 %v327, 0.0
    %v350 = vmax.f32 %v332, 0.0
    %v351 = vld [vmem:[%s3] sm:$0xf]
    %v352 = vld [vmem:[%s3 + $0x4] sm:$0xf]
    %v353 = vld [vmem:[%s3 + $0x8] sm:$0xf]
    %v354 = vld [vmem:[%s3 + $0xc] sm:$0xf]
    %v355 = vld [vmem:[%s3 + $0x10] sm:$0xf]
    %v356 = vld [vmem:[%s3 + $0x14] sm:$0xf]
    %v357 = vld [vmem:[%s3 + $0x18] sm:$0xf]
    %v358 = vld [vmem:[%s3 + $0x1c] sm:$0xf]
    %v359 = vld [vmem:[%s3 + $0x20] sm:$0xf]
    %v360 = vld [vmem:[%s3 + $0x24] sm:$0xf]
    %v361 = vld [vmem:[%s3 + $0x28] sm:$0xf]
    %v362 = vld [vmem:[%s3 + $0x2c] sm:$0xf]
    %v363 = vld [vmem:[%s3 + $0x30] sm:$0xf]
    %v364 = vld [vmem:[%s3 + $0x34] sm:$0xf]
    %v365 = vld [vmem:[%s3 + $0x38] sm:$0xf]
    %v366 = vld [vmem:[%s3 + $0x3c] sm:$0xf]
    %v367 = vpack.c.bf16 %v336, %v335
    %v368 = vpack.c.bf16 %v338, %v337
    %v369 = vpack.c.bf16 %v340, %v339
    %v370 = vpack.c.bf16 %v342, %v341
    %v371 = vpack.c.bf16 %v344, %v343
    %v372 = vpack.c.bf16 %v346, %v345
    %v373 = vpack.c.bf16 %v348, %v347
    %v374 = vpack.c.bf16 %v350, %v349
    %v375 = vld [vmem:[%s4] sm:$0xff]
    %v376 = vld [vmem:[%s4 + $0x8] sm:$0xff]
    %v377 = vld [vmem:[%s4 + $0x10] sm:$0xff]
    %v378 = vld [vmem:[%s4 + $0x18] sm:$0xff]
    %v379 = vld [vmem:[%s4 + $0x20] sm:$0xff]
    %v380 = vld [vmem:[%s4 + $0x28] sm:$0xff]
    %v381 = vld [vmem:[%s4 + $0x30] sm:$0xff]
    %v382 = vld [vmem:[%s4 + $0x38] sm:$0xff]
    %v383 = vld [vmem:[%s4 + $0x40] sm:$0xff]
    %v384 = vld [vmem:[%s4 + $0x48] sm:$0xff]
    %v385 = vld [vmem:[%s4 + $0x50] sm:$0xff]
    %v386 = vld [vmem:[%s4 + $0x58] sm:$0xff]
    %v387 = vld [vmem:[%s4 + $0x60] sm:$0xff]
    %v388 = vld [vmem:[%s4 + $0x68] sm:$0xff]
    %v389 = vld [vmem:[%s4 + $0x70] sm:$0xff]
    %v390 = vld [vmem:[%s4 + $0x78] sm:$0xff]
    %392 = vset.pattern.permute.xlu0 0
    %393 = vperm.xlu0 %392, %v375
    %v394 = vpop.permute.xlu0 %393
    %397 = vset.pattern.permute.xlu0 0
    %398 = vperm.xlu0 %397, %v376
    %v399 = vpop.permute.xlu0 %398
    %402 = vset.pattern.permute.xlu0 0
    %403 = vperm.xlu0 %402, %v377
    %v404 = vpop.permute.xlu0 %403
    %407 = vset.pattern.permute.xlu0 0
    %408 = vperm.xlu0 %407, %v378
    %v409 = vpop.permute.xlu0 %408
    %412 = vset.pattern.permute.xlu0 0
    %413 = vperm.xlu0 %412, %v379
    %v414 = vpop.permute.xlu0 %413
    %417 = vset.pattern.permute.xlu0 0
    %418 = vperm.xlu0 %417, %v380
    %v419 = vpop.permute.xlu0 %418
    %422 = vset.pattern.permute.xlu0 0
    %423 = vperm.xlu0 %422, %v381
    %v424 = vpop.permute.xlu0 %423
    %427 = vset.pattern.permute.xlu0 0
    %428 = vperm.xlu0 %427, %v382
    %v429 = vpop.permute.xlu0 %428
    %432 = vset.pattern.permute.xlu0 0
    %433 = vperm.xlu0 %432, %v383
    %v434 = vpop.permute.xlu0 %433
    %437 = vset.pattern.permute.xlu0 0
    %438 = vperm.xlu0 %437, %v384
    %v439 = vpop.permute.xlu0 %438
    %442 = vset.pattern.permute.xlu0 0
    %443 = vperm.xlu0 %442, %v385
    %v444 = vpop.permute.xlu0 %443
    %447 = vset.pattern.permute.xlu0 0
    %448 = vperm.xlu0 %447, %v386
    %v449 = vpop.permute.xlu0 %448
    %452 = vset.pattern.permute.xlu0 0
    %453 = vperm.xlu0 %452, %v387
    %v454 = vpop.permute.xlu0 %453
    %457 = vset.pattern.permute.xlu0 0
    %458 = vperm.xlu0 %457, %v388
    %v459 = vpop.permute.xlu0 %458
    %462 = vset.pattern.permute.xlu0 0
    %463 = vperm.xlu0 %462, %v389
    %v464 = vpop.permute.xlu0 %463
    %467 = vset.pattern.permute.xlu0 0
    %468 = vperm.xlu0 %467, %v390
    %v469 = vpop.permute.xlu0 %468
    %v487 = vunpack.c.l.b16 %v351
    %v488 = vunpack.c.l.b16 %v352
    %v489 = vunpack.c.l.b16 %v353
    %v490 = vunpack.c.l.b16 %v354
    %v491 = vunpack.c.l.b16 %v355
    %v492 = vunpack.c.l.b16 %v356
    %v493 = vunpack.c.l.b16 %v357
    %v494 = vunpack.c.l.b16 %v358
    %v495 = vunpack.c.l.b16 %v359
    %v496 = vunpack.c.l.b16 %v360
    %v497 = vunpack.c.l.b16 %v361
    %v498 = vunpack.c.l.b16 %v362
    %v499 = vunpack.c.l.b16 %v363
    %v500 = vunpack.c.l.b16 %v364
    %v501 = vunpack.c.l.b16 %v365
    %v502 = vunpack.c.l.b16 %v366
    %v503 = vpack.c.b16 %v488, %v487
    %v504 = vpack.c.b16 %v490, %v489
    %v505 = vpack.c.b16 %v492, %v491
    %v506 = vpack.c.b16 %v494, %v493
    %v507 = vpack.c.b16 %v496, %v495
    %v508 = vpack.c.b16 %v498, %v497
    %v509 = vpack.c.b16 %v500, %v499
    %v510 = vpack.c.b16 %v502, %v501
    %519 = vmatprep.subr.bf16.mxu0 0
    %520 = vmatpush1.bf16.msra.mxu0 %v367
    %521 = vmatprep.subr.bf16.mxu0 0
    %522 = vmatpush1.bf16.msra.mxu0 %v368
    %523 = vmatprep.subr.bf16.mxu0 0
    %524 = vmatpush1.bf16.msra.mxu0 %v369
    %525 = vmatprep.subr.bf16.mxu0 0
    %526 = vmatpush1.bf16.msra.mxu0 %v370
    %527 = vmatprep.subr.bf16.mxu0 0
    %528 = vmatpush1.bf16.msra.mxu0 %v371
    %529 = vmatprep.subr.bf16.mxu0 0
    %530 = vmatpush1.bf16.msra.mxu0 %v372
    %531 = vmatprep.subr.bf16.mxu0 0
    %532 = vmatpush1.bf16.msra.mxu0 %v373
    %533 = vmatprep.subr.bf16.mxu0 0
    %534 = vmatpush1.bf16.msra.mxu0 %v374
    %535 = vmatprep.subr.bf16.mxu0 0
    %536 = vmatpush1.bf16.msra.mxu0 0
    %537 = vmatprep.subr.bf16.mxu0 0
    %538 = vmatpush1.bf16.msra.mxu0 0
    %539 = vmatprep.subr.bf16.mxu0 0
    %540 = vmatpush1.bf16.msra.mxu0 0
    %541 = vmatprep.subr.bf16.mxu0 0
    %542 = vmatpush1.bf16.msra.mxu0 0
    %543 = vmatprep.subr.bf16.mxu0 0
    %544 = vmatpush1.bf16.msra.mxu0 0
    %545 = vmatprep.subr.bf16.mxu0 0
    %546 = vmatpush1.bf16.msra.mxu0 0
    %547 = vmatprep.subr.bf16.mxu0 0
    %548 = vmatpush1.bf16.msra.mxu0 0
    %549 = vmatprep.subr.bf16.mxu0 0
    %550 = vmatpush1.bf16.msra.mxu0 0
    %551 = vmatprep.mubr.bf16.mxu0 0
    %552 = vmatmul.mubr.bf16.gmra.mrb[0].mxu0 %v503
    %v553 = vpop.f32.mrb[0].mxu0
    %v554 = vadd.f32 %v394, %v553
    %v555 = vpop.f32.mrb[0].mxu0
    %v556 = vpop.f32.mrb[0].mxu0
    %v557 = vadd.f32 %v399, %v556
    %v558 = vpop.f32.mrb[0].mxu0
    %559 = vmatprep.mubr.bf16.mxu0 0
    %560 = vmatmul.mubr.bf16.gmra.mrb[0].mxu0 %v504
    %v561 = vpop.f32.mrb[0].mxu0
    %v562 = vadd.f32 %v404, %v561
    %v563 = vpop.f32.mrb[0].mxu0
    %v564 = vpop.f32.mrb[0].mxu0
    %v565 = vadd.f32 %v409, %v564
    %v566 = vpop.f32.mrb[0].mxu0
    %567 = vmatprep.mubr.bf16.mxu0 0
    %568 = vmatmul.mubr.bf16.gmra.mrb[0].mxu0 %v505
    %v569 = vpop.f32.mrb[0].mxu0
    %v570 = vadd.f32 %v414, %v569
    %v571 = vpop.f32.mrb[0].mxu0
    %v572 = vpop.f32.mrb[0].mxu0
    %v573 = vadd.f32 %v419, %v572
    %v574 = vpop.f32.mrb[0].mxu0
    %575 = vmatprep.mubr.bf16.mxu0 0
    %576 = vmatmul.mubr.bf16.gmra.mrb[0].mxu0 %v506
    %v577 = vpop.f32.mrb[0].mxu0
    %v578 = vadd.f32 %v424, %v577
    %v579 = vpop.f32.mrb[0].mxu0
    %v580 = vpop.f32.mrb[0].mxu0
    %v581 = vadd.f32 %v429, %v580
    %v582 = vpop.f32.mrb[0].mxu0
    %583 = vmatprep.mubr.bf16.mxu0 0
    %584 = vmatmul.mubr.bf16.gmra.mrb[0].mxu0 %v507
    %v585 = vpop.f32.mrb[0].mxu0
    %v586 = vadd.f32 %v434, %v585
    %v587 = vpop.f32.mrb[0].mxu0
    %v588 = vpop.f32.mrb[0].mxu0
    %v589 = vadd.f32 %v439, %v588
    %v590 = vpop.f32.mrb[0].mxu0
    %591 = vmatprep.mubr.bf16.mxu0 0
    %592 = vmatmul.mubr.bf16.gmra.mrb[0].mxu0 %v508
    %v593 = vpop.f32.mrb[0].mxu0
    %v594 = vadd.f32 %v444, %v593
    %v595 = vpop.f32.mrb[0].mxu0
    %v596 = vpop.f32.mrb[0].mxu0
    %v597 = vadd.f32 %v449, %v596
    %v598 = vpop.f32.mrb[0].mxu0
    %599 = vmatprep.mubr.bf16.mxu0 0
    %600 = vmatmul.mubr.bf16.gmra.mrb[0].mxu0 %v509
    %v601 = vpop.f32.mrb[0].mxu0
    %v602 = vadd.f32 %v454, %v601
    %v603 = vpop.f32.mrb[0].mxu0
    %v604 = vpop.f32.mrb[0].mxu0
    %v605 = vadd.f32 %v459, %v604
    %v606 = vpop.f32.mrb[0].mxu0
    %607 = vmatprep.mubr.bf16.mxu0 0
    %608 = vmatmul.mubr.bf16.gmra.mrb[0].mxu0 %v510
    %v609 = vpop.f32.mrb[0].mxu0
    %v610 = vadd.f32 %v464, %v609
    %v611 = vpop.f32.mrb[0].mxu0
    %v612 = vpop.f32.mrb[0].mxu0
    %v613 = vadd.f32 %v469, %v612
    %v614 = vpop.f32.mrb[0].mxu0
    %615 = vdwg.mxu0
    %v616 = vmax.f32 %v554, 0.0
    %v617 = vmax.f32 %v557, 0.0
    %v618 = vmax.f32 %v562, 0.0
    %v619 = vmax.f32 %v565, 0.0
    %v620 = vmax.f32 %v570, 0.0
    %v621 = vmax.f32 %v573, 0.0
    %v622 = vmax.f32 %v578, 0.0
    %v623 = vmax.f32 %v581, 0.0
    %v624 = vmax.f32 %v586, 0.0
    %v625 = vmax.f32 %v589, 0.0
    %v626 = vmax.f32 %v594, 0.0
    %v627 = vmax.f32 %v597, 0.0
    %v628 = vmax.f32 %v602, 0.0
    %v629 = vmax.f32 %v605, 0.0
    %v630 = vmax.f32 %v610, 0.0
    %v631 = vmax.f32 %v613, 0.0
    %v632 = vld [vmem:[%s5] sm:$0xf]
    %v633 = vpack.c.bf16 %v617, %v616
    %v634 = vpack.c.bf16 %v619, %v618
    %v635 = vpack.c.bf16 %v621, %v620
    %v636 = vpack.c.bf16 %v623, %v622
    %v637 = vpack.c.bf16 %v625, %v624
    %v638 = vpack.c.bf16 %v627, %v626
    %v639 = vpack.c.bf16 %v629, %v628
    %v640 = vpack.c.bf16 %v631, %v630
    %v641 = vld [vmem:[%s6] sm:$0xff]
    %643 = vset.pattern.permute.xlu0 0
    %644 = vperm.xlu0 %643, %v641
    %v645 = vpop.permute.xlu0 %644
    %647 = vmatprep.subr.bf16.mxu0 0
    %648 = vmatpush1.bf16.msra.mxu0 %v633
    %649 = vmatprep.subr.bf16.mxu0 0
    %650 = vmatpush1.bf16.msra.mxu0 %v634
    %651 = vmatprep.subr.bf16.mxu0 0
    %652 = vmatpush1.bf16.msra.mxu0 %v635
    %653 = vmatprep.subr.bf16.mxu0 0
    %654 = vmatpush1.bf16.msra.mxu0 %v636
    %655 = vmatprep.subr.bf16.mxu0 0
    %656 = vmatpush1.bf16.msra.mxu0 %v637
    %657 = vmatprep.subr.bf16.mxu0 0
    %658 = vmatpush1.bf16.msra.mxu0 %v638
    %659 = vmatprep.subr.bf16.mxu0 0
    %660 = vmatpush1.bf16.msra.mxu0 %v639
    %661 = vmatprep.subr.bf16.mxu0 0
    %662 = vmatpush1.bf16.msra.mxu0 %v640
    %663 = vmatprep.subr.bf16.mxu0 0
    %664 = vmatpush1.bf16.msra.mxu0 0
    %665 = vmatprep.subr.bf16.mxu0 0
    %666 = vmatpush1.bf16.msra.mxu0 0
    %667 = vmatprep.subr.bf16.mxu0 0
    %668 = vmatpush1.bf16.msra.mxu0 0
    %669 = vmatprep.subr.bf16.mxu0 0
    %670 = vmatpush1.bf16.msra.mxu0 0
    %671 = vmatprep.subr.bf16.mxu0 0
    %672 = vmatpush1.bf16.msra.mxu0 0
    %673 = vmatprep.subr.bf16.mxu0 0
    %674 = vmatpush1.bf16.msra.mxu0 0
    %675 = vmatprep.subr.bf16.mxu0 0
    %676 = vmatpush1.bf16.msra.mxu0 0
    %677 = vmatprep.subr.bf16.mxu0 0
    %678 = vmatpush1.bf16.msra.mxu0 0
    %679 = vmatprep.mubr.bf16.mxu0 0
    %680 = vmatmul.mubr.bf16.gmra.mrb[0].mxu0 %v632
    %v681 = vpop.f32.mrb[0].mxu0
    %v682 = vadd.f32 %v645, %v681
    %v683 = vpop.f32.mrb[0].mxu0
    %v684 = vpop.f32.mrb[0].mxu0
    %v685 = vpop.f32.mrb[0].mxu0
    %686 = vdwg.mxu0
    %687 = vst [vmem:[#allocation2] sm:$0xff] %v682
    // Predicated region
    $region30: #{tpu_custom_call.1} parent=1 // pred_check
      _
    $region31: #{tpu_custom_call.1} parent=1 // pred_check_branch
      %689 = sbr.rel (0) target = $region33
    $region32: #{tpu_custom_call.1} parent=1 // pred_region
      %s691 = ssub.s32 128, 128
      %692 = vsyncadd [#allocation3], %s691
      %s694 = sshll.u32 [#allocation2], 4
      %s695 = int_to_ptr.vmem [resolvable:$true] %s694
      %697 = dma.vmem_to_hbm [thread:$0]  %s695, 128, %s7, [#allocation3]
    $region33: #{tpu_custom_call.1} parent=1 // pred_fallthru
      _
    // Predicated region
    $region34: #{tpu_custom_call.1} parent=1 // pred_check
      _
    $region35: #{tpu_custom_call.1} parent=1 // pred_check_branch
      %699 = sbr.rel (0) target = $region37
    $region36: #{tpu_custom_call.1} parent=1 // pred_region
      %700 = dma.done [#allocation3], 128
    $region37: #{tpu_custom_call.1} parent=1 // pred_fallthru
      _
    %701 = vsyncpa [#allocation3], 1

</llo_original>
